<compile_context>
chip_gen: v5e
topology: v5e:2x2
jax: 0.10.0
libtpu: 0.0.40
codegen_flags: <defaults>
</compile_context>

<pallas_src>
import math
import functools

import jax
import jax.numpy as jnp
import numpy as np
from jax.experimental import pallas as pl
from jax.experimental.pallas import tpu as pltpu


# ----------------------------------------------------------------------------
# Pallas kernel: fused projectors + L2-normalize + contrastive logits
# ----------------------------------------------------------------------------
def moco_kernel(xq_ref, xk_ref,
                w1q_ref, b1q_ref, w2q_ref, b2q_ref,
                w1k_ref, b1k_ref, w2k_ref, b2k_ref,
                queue_ref,
                lpos_ref, lneg_ref, kout_ref,
                qn_scr, kt_scr, lpos_scr, *, inv_temp):
    """grid = (batch_tiles, K_tiles); K is the innermost ("arbitrary") axis.

    At k_tile == 0 both projector branches run once per batch tile; the
    normalized q (pre-scaled by 1/T, cast to queue dtype) and the transposed
    k keys are cached in VMEM scratch.  Every K step computes one lane-dense
    (TB, TK) slab of negative logits with a single MXU matmul.  l_pos and the
    transposed key block are finalized on the last K step (flash-style).
    """
    k_tile = pl.program_id(1)
    n_k = pl.num_programs(1)

    @pl.when(k_tile == 0)
    def _projector():
        eps = 1e-12  # torch.nn.functional.normalize default eps

        def proj(x_ref, w1_ref, b1_ref, w2_ref, b2_ref):
            # Linear -> ReLU -> Linear (matmul operands in weight dtype,
            # f32 accumulation; bias add / ReLU in f32).
            x = x_ref[...]
            h = jnp.dot(x.astype(w1_ref.dtype), w1_ref[...],
                        preferred_element_type=jnp.float32) + b1_ref[...]
            h = jnp.maximum(h, 0.0)
            return jnp.dot(h.astype(w2_ref.dtype), w2_ref[...],
                           preferred_element_type=jnp.float32) + b2_ref[...]

        def l2norm(y):
            # x / max(||x||, eps) == x * rsqrt(max(||x||^2, eps^2))  (EUP rsqrt)
            return y * jax.lax.rsqrt(
                jnp.maximum(jnp.sum(y * y, axis=1, keepdims=True), eps * eps))

        qn = l2norm(proj(xq_ref, w1q_ref, b1q_ref, w2q_ref, b2q_ref))
        kn = l2norm(proj(xk_ref, w1k_ref, b1k_ref, w2k_ref, b2k_ref))
        lpos_scr[...] = jnp.sum(qn * kn, axis=1, keepdims=True) * inv_temp
        # Fold 1/T and the queue-dtype cast into the cached qn once.
        qn_scr[...] = (qn * inv_temp).astype(qn_scr.dtype)
        # Cache keys already transposed -> enqueue is a pure column write.
        kt_scr[...] = kn.T.astype(kt_scr.dtype)

    # Negative logits for this queue tile: one MXU matmul, lane-dense store.
    # (1/T is already folded into qn_scr, no per-slab VPU pass.)
    lneg_ref[...] = jnp.dot(qn_scr[...], queue_ref[...],
                            preferred_element_type=jnp.float32
                            ).astype(lneg_ref.dtype)

    @pl.when(k_tile == n_k - 1)
    def _finalize():
        lpos_ref[...] = lpos_scr[...]
        kout_ref[...] = kt_scr[...].astype(kout_ref.dtype)


# ----------------------------------------------------------------------------
# Wrapper: momentum update, pallas_call, labels, in-place enqueue
# ----------------------------------------------------------------------------
def moco_forward(rtn_q, rtn_k, params_q, params_k, queue, queue_ptr,
                 mmt=0.999, temperature=0.07, tb=None, tk=None,
                 logits_dtype=jnp.float32):
    # momentum update of the key projector (torch.no_grad() in the reference)
    params_k = jax.tree_util.tree_map(
        lambda pk, pq: pk * mmt + pq * (1.0 - mmt), params_k, params_q)
    # key branch / queue are detached in the reference
    # TODO(synk): pallas_call has no custom VJP here; define one for training.
    w1k, b1k, w2k, b2k = jax.tree_util.tree_map(jax.lax.stop_gradient, params_k)
    w1q, b1q, w2q, b2q = params_q
    rtn_k = jax.lax.stop_gradient(rtn_k)
    queue_sg = jax.lax.stop_gradient(queue)

    N, nemb = rtn_q.shape
    nout, K = queue.shape

    # Tile selection.
    # TODO(synk): production sizes -> TB=128 (v5e) / 256 (v6e/v7x), with at
    #             least 2 batch tiles on v7x (2 TensorCores), TK ~2-4K (v6e)
    #             or <=2K (v7x), and keep nout a multiple of 128.
    TB = N if tb is None else tb
    TK = K if tk is None else tk
    assert N % TB == 0 and K % TK == 0

    kernel = functools.partial(moco_kernel, inv_temp=float(1.0 / temperature))

    wsize = jnp.dtype(w1q.dtype).itemsize
    qsize = jnp.dtype(queue.dtype).itemsize
    lsize = jnp.dtype(logits_dtype).itemsize
    xsize = jnp.dtype(rtn_q.dtype).itemsize

    # Advisory cost estimate (projectors + qn @ queue).
    flops = 4 * N * nemb * (nemb + nout) + 2 * N * nout * K
    bytes_accessed = (2 * N * nemb * xsize
                      + 2 * (nemb * nemb + nemb + nemb * nout + nout) * wsize
                      + nout * K * qsize
                      + N * K * lsize
                      + N * 4 + nout * N * qsize)
    cost = pl.CostEstimate(flops=flops, transcendentals=2 * N,
                           bytes_accessed=bytes_accessed)

    # Explicit VMEM budget: resident weights (x2 for pipelining headroom) +
    # double-buffered input / queue / l_neg tiles + scratch + margin.
    # Clamped to 64 MiB so the same sizing logic holds on v7x.
    vmem_bytes = (2 * 2 * (nemb * nemb + nemb + nemb * nout + nout) * wsize
                  + 2 * 2 * TB * nemb * xsize
                  + 2 * nout * TK * qsize
                  + 2 * TB * TK * lsize
                  + 2 * TB * nout * qsize + TB * 4
                  + (2 << 20))
    vmem_bytes = int(min(max(vmem_bytes, 4 << 20), 64 << 20))

    l_pos, l_neg, k_keys_t = pl.pallas_call(
        kernel,
        out_shape=(jax.ShapeDtypeStruct((N, 1), jnp.float32),      # l_pos
                   jax.ShapeDtypeStruct((N, K), logits_dtype),     # l_neg
                   jax.ShapeDtypeStruct((nout, N), queue.dtype)),  # keys^T
        grid=(N // TB, K // TK),
        in_specs=[
            pl.BlockSpec((TB, nemb), lambda i, k: (i, 0)),   # rtn_q tile
            pl.BlockSpec((TB, nemb), lambda i, k: (i, 0)),   # rtn_k tile
            pl.BlockSpec(w1q.shape, lambda i, k: (0, 0)),
            pl.BlockSpec(b1q.shape, lambda i, k: (0, 0)),
            pl.BlockSpec(w2q.shape, lambda i, k: (0, 0)),
            pl.BlockSpec(b2q.shape, lambda i, k: (0, 0)),
            pl.BlockSpec(w1k.shape, lambda i, k: (0, 0)),
            pl.BlockSpec(b1k.shape, lambda i, k: (0, 0)),
            pl.BlockSpec(w2k.shape, lambda i, k: (0, 0)),
            pl.BlockSpec(b2k.shape, lambda i, k: (0, 0)),
            pl.BlockSpec((nout, TK), lambda i, k: (0, k)),   # queue tile
        ],
        out_specs=(
            pl.BlockSpec((TB, 1), lambda i, k: (i, 0)),      # l_pos
            pl.BlockSpec((TB, TK), lambda i, k: (i, k)),     # l_neg (lane-dense)
            pl.BlockSpec((nout, TB), lambda i, k: (0, i)),   # keys^T
        ),
        scratch_shapes=[pltpu.VMEM((TB, nout), queue.dtype),   # qn * (1/T)
                        pltpu.VMEM((nout, TB), queue.dtype),   # kn^T
                        pltpu.VMEM((TB, 1), jnp.float32)],     # l_pos
        compiler_params=pltpu.CompilerParams(
            dimension_semantics=("parallel", "arbitrary"),
            vmem_limit_bytes=vmem_bytes),
        cost_estimate=cost,
    )(rtn_q, rtn_k, w1q, b1q, w2q, b2q, w1k, b1k, w2k, b2k, queue_sg)

    # logits are returned split (label 0 corresponds to the l_pos column) so
    # the (N, K) slab the kernel just stored lane-dense is never re-copied.
    labels = jnp.zeros((N,), dtype=jnp.int32)   # PyTorch uses int64 (long)

    # dequeue & enqueue.  Donate `queue` at the jit boundary (see __main__) so
    # this is an in-place column write of the already-transposed keys.
    # TODO(synk): pointer-wraparound branch of _dequeue_and_enqueue not needed
    #             when queue_size % batch == 0 (standard MoCo assumption).
    ptr = queue_ptr[0]
    queue = jax.lax.dynamic_update_slice(
        queue, k_keys_t.astype(queue.dtype), (0, ptr))
    queue_ptr = queue_ptr.at[0].set((ptr + N) % K)

    return l_pos, l_neg, labels, params_k, queue, queue_ptr


# simple stand-in encoder (the PyTorch module takes encoder_q/encoder_k as
# external submodules): returns (output, rtn) like the reference expects.
def simple_encoder(x, we, be):
    rtn = jnp.maximum(x @ we + be, 0.0)
    return rtn, rtn


# pure-JAX reference of the same forward math (for correctness checking)
def pure_jax_reference(rtn_q, rtn_k, params_q, params_k, queue, queue_ptr,
                       mmt, temperature):
    params_k = jax.tree_util.tree_map(
        lambda pk, pq: pk * mmt + pq * (1.0 - mmt), params_k, params_q)
    w1q, b1q, w2q, b2q = params_q
    w1k, b1k, w2k, b2k = params_k

    def proj(x, w1, b1, w2, b2):
        return jnp.maximum(x @ w1 + b1, 0.0) @ w2 + b2

    def l2norm(x):
        return x / jnp.maximum(
            jnp.sqrt(jnp.sum(x * x, axis=1, keepdims=True)), 1e-12)

    q = l2norm(proj(rtn_q, w1q, b1q, w2q, b2q))
    k = l2norm(proj(rtn_k, w1k, b1k, w2k, b2k))
    l_pos = jnp.sum(q * k, axis=1, keepdims=True)
    l_neg = q @ queue
    logits = jnp.concatenate([l_pos, l_neg], axis=1) / temperature
    new_queue = jax.lax.dynamic_update_slice(queue, k.T, (0, queue_ptr[0]))
    return logits, new_queue


# ----------------------------------------------------------------------------
if __name__ == "__main__":
    key = jax.random.PRNGKey(0)
    N, D_in, nemb, nout, K = 8, 64, 32, 16, 256
    mmt, temperature = 0.999, 0.07
    ks = jax.random.split(key, 8)

    def xavier_normal(k, fan_in, fan_out, gain=1.414):
        std = gain * math.sqrt(2.0 / (fan_in + fan_out))
        return std * jax.random.normal(k, (fan_in, fan_out), jnp.float32)

    # encoder params (key encoder copies query encoder at init, as in MoCo)
    we = xavier_normal(ks[0], D_in, nemb)
    be = jnp.zeros((1, nemb), jnp.float32)

    # projector params (weights stored (in, out); biases zero; key copies query)
    w1 = xavier_normal(ks[1], nemb, nemb)
    b1 = jnp.zeros((1, nemb), jnp.float32)
    w2 = xavier_normal(ks[2], nemb, nout)
    b2 = jnp.zeros((1, nout), jnp.float32)
    params_q = (w1, b1, w2, b2)
    params_k = tuple(jnp.array(p) for p in params_q)

    # queue buffer: randn, column-normalized (dim=0)
    queue = jax.random.normal(ks[3], (nout, K), jnp.float32)
    queue = queue / jnp.maximum(
        jnp.sqrt(jnp.sum(queue * queue, axis=0, keepdims=True)), 1e-12)
    queue_ptr = jnp.zeros((1,), jnp.int32)

    # inputs
    x_q = jax.random.normal(ks[4], (N, D_in), jnp.float32)
    x_k = jax.random.normal(ks[5], (N, D_in), jnp.float32)
    _, rtn_q = simple_encoder(x_q, we, be)
    _, rtn_k = simple_encoder(x_k, we, be)  # momentum encoder == query encoder at init

    # reference first (before the queue buffer is donated to the kernel call)
    ref_logits, ref_queue = pure_jax_reference(
        rtn_q, rtn_k, params_q, params_k, queue, queue_ptr, mmt, temperature)
    ref_logits, ref_queue = jax.block_until_ready((ref_logits, ref_queue))

    fwd = jax.jit(
        functools.partial(moco_forward, mmt=mmt, temperature=temperature,
                          tk=128),          # 2 queue tiles -> exercises K pipeline
        donate_argnums=(4,))                # donate queue: in-place enqueue

    l_pos, l_neg, labels, params_k, queue, queue_ptr = fwd(
        rtn_q, rtn_k, params_q, params_k, queue, queue_ptr)
    jax.block_until_ready((l_pos, l_neg, labels, queue, queue_ptr))

    assert l_pos.shape == (N, 1)
    assert l_neg.shape == (N, K)
    assert labels.shape == (N,)
    assert queue.shape == (nout, K)

    # Concatenate ONLY for the off-path correctness check (label 0 == l_pos).
    logits = np.concatenate([np.asarray(l_pos), np.asarray(l_neg)], axis=1)
    # Loose tolerance: MXU default-precision matmuls inside/outside the kernel
    # may round differently; real bugs produce O(1) deviations.
    np.testing.assert_allclose(logits, np.asarray(ref_logits),
                               rtol=5e-2, atol=2e-1)
    np.testing.assert_allclose(np.asarray(queue), np.asarray(ref_queue),
                               rtol=5e-2, atol=2e-1)
    print("KERNEL_OK")
</pallas_src>

<mosaic_0001>
module attributes {stable_mosaic.version = 11 : i64} {
  func.func @moco_kernel(%arg0: i32, %arg1: i32, %arg2: memref<8x32xf32, #tpu.memory_space<vmem>>, %arg3: memref<8x32xf32, #tpu.memory_space<vmem>>, %arg4: memref<32x32xf32, #tpu.memory_space<vmem>>, %arg5: memref<1x32xf32, #tpu.memory_space<vmem>>, %arg6: memref<32x16xf32, #tpu.memory_space<vmem>>, %arg7: memref<1x16xf32, #tpu.memory_space<vmem>>, %arg8: memref<32x32xf32, #tpu.memory_space<vmem>>, %arg9: memref<1x32xf32, #tpu.memory_space<vmem>>, %arg10: memref<32x16xf32, #tpu.memory_space<vmem>>, %arg11: memref<1x16xf32, #tpu.memory_space<vmem>>, %arg12: memref<16x128xf32, #tpu.memory_space<vmem>>, %arg13: memref<8x1xf32, #tpu.memory_space<vmem>>, %arg14: memref<8x128xf32, #tpu.memory_space<vmem>>, %arg15: memref<16x8xf32, #tpu.memory_space<vmem>>, %arg16: memref<8x16xf32, #tpu.memory_space<vmem>>, %arg17: memref<16x8xf32, #tpu.memory_space<vmem>>, %arg18: memref<8x1xf32, #tpu.memory_space<vmem>>) attributes {dimension_semantics = [#tpu.dimension_semantics<parallel>, #tpu.dimension_semantics<arbitrary>], iteration_bounds = array<i64: 1, 2>, scalar_prefetch = 0 : i64, scratch_operands = 3 : i64, tpu.core_type = #tpu.core_type<tc>, window_params = [{transform_indices = @transform_0, window_bounds = array<i64: 8, 32>}, {transform_indices = @transform_1, window_bounds = array<i64: 8, 32>}, {pipeline_mode = #tpu.pipeline_mode<synchronous>, transform_indices = @transform_2, window_bounds = array<i64: 32, 32>}, {pipeline_mode = #tpu.pipeline_mode<synchronous>, transform_indices = @transform_3, window_bounds = array<i64: 1, 32>}, {pipeline_mode = #tpu.pipeline_mode<synchronous>, transform_indices = @transform_4, window_bounds = array<i64: 32, 16>}, {pipeline_mode = #tpu.pipeline_mode<synchronous>, transform_indices = @transform_5, window_bounds = array<i64: 1, 16>}, {pipeline_mode = #tpu.pipeline_mode<synchronous>, transform_indices = @transform_6, window_bounds = array<i64: 32, 32>}, {pipeline_mode = #tpu.pipeline_mode<synchronous>, transform_indices = @transform_7, window_bounds = array<i64: 1, 32>}, {pipeline_mode = #tpu.pipeline_mode<synchronous>, transform_indices = @transform_8, window_bounds = array<i64: 32, 16>}, {pipeline_mode = #tpu.pipeline_mode<synchronous>, transform_indices = @transform_9, window_bounds = array<i64: 1, 16>}, {transform_indices = @transform_10, window_bounds = array<i64: 16, 128>}, {transform_indices = @transform_11, window_bounds = array<i64: 8, 1>}, {transform_indices = @transform_12, window_bounds = array<i64: 8, 128>}, {transform_indices = @transform_13, window_bounds = array<i64: 16, 8>}]} {
    %c0_i32 = arith.constant 0 : i32
    %0 = arith.cmpi eq, %arg1, %c0_i32 : i32
    %1 = arith.extui %0 : i1 to i32
    %c0_i32_0 = arith.constant 0 : i32
    %2 = arith.cmpi ne, %1, %c0_i32_0 : i32
    scf.if %2 {
      %c0_7 = arith.constant 0 : index
      %c0_8 = arith.constant 0 : index
      %10 = vector.load %arg2[%c0_7, %c0_8] : memref<8x32xf32, #tpu.memory_space<vmem>>, vector<8x32xf32>
      %c0_9 = arith.constant 0 : index
      %c0_10 = arith.constant 0 : index
      %11 = vector.load %arg4[%c0_9, %c0_10] : memref<32x32xf32, #tpu.memory_space<vmem>>, vector<32x32xf32>
      %cst_11 = arith.constant dense<0.000000e+00> : vector<8x32xf32>
      %12 = tpu.matmul %10, %11, %cst_11 {dimension_numbers = #tpu.dot_dimension_numbers<[1], [0], [0], [1], [0, 0, 1, 1], [], []>} : vector<8x32xf32>, vector<32x32xf32>, vector<8x32xf32> -> vector<8x32xf32>
      %c0_12 = arith.constant 0 : index
      %c0_13 = arith.constant 0 : index
      %13 = vector.load %arg5[%c0_12, %c0_13] : memref<1x32xf32, #tpu.memory_space<vmem>>, vector<1x32xf32>
      %14 = vector.broadcast %13 : vector<1x32xf32> to vector<8x32xf32>
      %15 = arith.addf %12, %14 : vector<8x32xf32>
      %cst_14 = arith.constant 0.000000e+00 : f32
      %16 = vector.broadcast %cst_14 : f32 to vector<8x32xf32>
      %17 = arith.maximumf %15, %16 : vector<8x32xf32>
      %c0_15 = arith.constant 0 : index
      %c0_16 = arith.constant 0 : index
      %18 = vector.load %arg6[%c0_15, %c0_16] : memref<32x16xf32, #tpu.memory_space<vmem>>, vector<32x16xf32>
      %cst_17 = arith.constant dense<0.000000e+00> : vector<8x16xf32>
      %19 = tpu.matmul %17, %18, %cst_17 {dimension_numbers = #tpu.dot_dimension_numbers<[1], [0], [0], [1], [0, 0, 1, 1], [], []>} : vector<8x32xf32>, vector<32x16xf32>, vector<8x16xf32> -> vector<8x16xf32>
      %c0_18 = arith.constant 0 : index
      %c0_19 = arith.constant 0 : index
      %20 = vector.load %arg7[%c0_18, %c0_19] : memref<1x16xf32, #tpu.memory_space<vmem>>, vector<1x16xf32>
      %21 = vector.broadcast %20 : vector<1x16xf32> to vector<8x16xf32>
      %22 = arith.addf %19, %21 : vector<8x16xf32>
      %23 = arith.mulf %22, %22 : vector<8x16xf32>
      %cst_20 = arith.constant dense<0.000000e+00> : vector<8xf32>
      %24 = vector.multi_reduction <add>, %23, %cst_20 [1] : vector<8x16xf32> to vector<8xf32>
      %25 = vector.shape_cast %24 : vector<8xf32> to vector<8x1xf32>
      %cst_21 = arith.constant 1.000000e-24 : f32
      %26 = vector.broadcast %cst_21 : f32 to vector<8x1xf32>
      %27 = arith.maximumf %25, %26 : vector<8x1xf32>
      %28 = math.rsqrt %27 : vector<8x1xf32>
      %29 = vector.broadcast %28 : vector<8x1xf32> to vector<8x16xf32>
      %30 = arith.mulf %22, %29 : vector<8x16xf32>
      %c0_22 = arith.constant 0 : index
      %c0_23 = arith.constant 0 : index
      %31 = vector.load %arg3[%c0_22, %c0_23] : memref<8x32xf32, #tpu.memory_space<vmem>>, vector<8x32xf32>
      %c0_24 = arith.constant 0 : index
      %c0_25 = arith.constant 0 : index
      %32 = vector.load %arg8[%c0_24, %c0_25] : memref<32x32xf32, #tpu.memory_space<vmem>>, vector<32x32xf32>
      %cst_26 = arith.constant dense<0.000000e+00> : vector<8x32xf32>
      %33 = tpu.matmul %31, %32, %cst_26 {dimension_numbers = #tpu.dot_dimension_numbers<[1], [0], [0], [1], [0, 0, 1, 1], [], []>} : vector<8x32xf32>, vector<32x32xf32>, vector<8x32xf32> -> vector<8x32xf32>
      %c0_27 = arith.constant 0 : index
      %c0_28 = arith.constant 0 : index
      %34 = vector.load %arg9[%c0_27, %c0_28] : memref<1x32xf32, #tpu.memory_space<vmem>>, vector<1x32xf32>
      %35 = vector.broadcast %34 : vector<1x32xf32> to vector<8x32xf32>
      %36 = arith.addf %33, %35 : vector<8x32xf32>
      %cst_29 = arith.constant 0.000000e+00 : f32
      %37 = vector.broadcast %cst_29 : f32 to vector<8x32xf32>
      %38 = arith.maximumf %36, %37 : vector<8x32xf32>
      %c0_30 = arith.constant 0 : index
      %c0_31 = arith.constant 0 : index
      %39 = vector.load %arg10[%c0_30, %c0_31] : memref<32x16xf32, #tpu.memory_space<vmem>>, vector<32x16xf32>
      %cst_32 = arith.constant dense<0.000000e+00> : vector<8x16xf32>
      %40 = tpu.matmul %38, %39, %cst_32 {dimension_numbers = #tpu.dot_dimension_numbers<[1], [0], [0], [1], [0, 0, 1, 1], [], []>} : vector<8x32xf32>, vector<32x16xf32>, vector<8x16xf32> -> vector<8x16xf32>
      %c0_33 = arith.constant 0 : index
      %c0_34 = arith.constant 0 : index
      %41 = vector.load %arg11[%c0_33, %c0_34] : memref<1x16xf32, #tpu.memory_space<vmem>>, vector<1x16xf32>
      %42 = vector.broadcast %41 : vector<1x16xf32> to vector<8x16xf32>
      %43 = arith.addf %40, %42 : vector<8x16xf32>
      %44 = arith.mulf %43, %43 : vector<8x16xf32>
      %cst_35 = arith.constant dense<0.000000e+00> : vector<8xf32>
      %45 = vector.multi_reduction <add>, %44, %cst_35 [1] : vector<8x16xf32> to vector<8xf32>
      %46 = vector.shape_cast %45 : vector<8xf32> to vector<8x1xf32>
      %cst_36 = arith.constant 1.000000e-24 : f32
      %47 = vector.broadcast %cst_36 : f32 to vector<8x1xf32>
      %48 = arith.maximumf %46, %47 : vector<8x1xf32>
      %49 = math.rsqrt %48 : vector<8x1xf32>
      %50 = vector.broadcast %49 : vector<8x1xf32> to vector<8x16xf32>
      %51 = arith.mulf %43, %50 : vector<8x16xf32>
      %52 = arith.mulf %30, %51 : vector<8x16xf32>
      %cst_37 = arith.constant dense<0.000000e+00> : vector<8xf32>
      %53 = vector.multi_reduction <add>, %52, %cst_37 [1] : vector<8x16xf32> to vector<8xf32>
      %54 = vector.shape_cast %53 : vector<8xf32> to vector<8x1xf32>
      %cst_38 = arith.constant 14.2857141 : f32
      %55 = vector.broadcast %cst_38 : f32 to vector<8x1xf32>
      %56 = arith.mulf %54, %55 : vector<8x1xf32>
      %c0_39 = arith.constant 0 : index
      %c0_40 = arith.constant 0 : index
      %57 = vector.load %arg18[%c0_39, %c0_40] : memref<8x1xf32, #tpu.memory_space<vmem>>, vector<8x1xf32>
      tpu.vector_store %arg18[%c0_39, %c0_40], %56 {strides = array<i32>} : memref<8x1xf32, #tpu.memory_space<vmem>>, vector<8x1xf32>,
      %cst_41 = arith.constant 14.2857141 : f32
      %58 = vector.broadcast %cst_41 : f32 to vector<8x16xf32>
      %59 = arith.mulf %30, %58 : vector<8x16xf32>
      %c0_42 = arith.constant 0 : index
      %c0_43 = arith.constant 0 : index
      %60 = vector.load %arg16[%c0_42, %c0_43] : memref<8x16xf32, #tpu.memory_space<vmem>>, vector<8x16xf32>
      tpu.vector_store %arg16[%c0_42, %c0_43], %59 {strides = array<i32>} : memref<8x16xf32, #tpu.memory_space<vmem>>, vector<8x16xf32>,
      %61 = tpu.transpose %51, [1, 0] : vector<8x16xf32> -> vector<16x8xf32>
      %c0_44 = arith.constant 0 : index
      %c0_45 = arith.constant 0 : index
      %62 = vector.load %arg17[%c0_44, %c0_45] : memref<16x8xf32, #tpu.memory_space<vmem>>, vector<16x8xf32>
      tpu.vector_store %arg17[%c0_44, %c0_45], %61 {strides = array<i32>} : memref<16x8xf32, #tpu.memory_space<vmem>>, vector<16x8xf32>,
    } else {
    }
    %c0 = arith.constant 0 : index
    %c0_1 = arith.constant 0 : index
    %3 = vector.load %arg16[%c0, %c0_1] : memref<8x16xf32, #tpu.memory_space<vmem>>, vector<8x16xf32>
    %c0_2 = arith.constant 0 : index
    %c0_3 = arith.constant 0 : index
    %4 = vector.load %arg12[%c0_2, %c0_3] : memref<16x128xf32, #tpu.memory_space<vmem>>, vector<16x128xf32>
    %cst = arith.constant dense<0.000000e+00> : vector<8x128xf32>
    %5 = tpu.matmul %3, %4, %cst {dimension_numbers = #tpu.dot_dimension_numbers<[1], [0], [0], [1], [0, 0, 1, 1], [], []>} : vector<8x16xf32>, vector<16x128xf32>, vector<8x128xf32> -> vector<8x128xf32>
    %c0_4 = arith.constant 0 : index
    %c0_5 = arith.constant 0 : index
    %6 = vector.load %arg14[%c0_4, %c0_5] : memref<8x128xf32, #tpu.memory_space<vmem>>, vector<8x128xf32>
    tpu.vector_store %arg14[%c0_4, %c0_5], %5 {strides = array<i32>} : memref<8x128xf32, #tpu.memory_space<vmem>>, vector<8x128xf32>,
    %c1_i32 = arith.constant 1 : i32
    %7 = arith.cmpi eq, %arg1, %c1_i32 : i32
    %8 = arith.extui %7 : i1 to i32
    %c0_i32_6 = arith.constant 0 : i32
    %9 = arith.cmpi ne, %8, %c0_i32_6 : i32
    scf.if %9 {
      %c0_7 = arith.constant 0 : index
      %c0_8 = arith.constant 0 : index
      %10 = vector.load %arg18[%c0_7, %c0_8] : memref<8x1xf32, #tpu.memory_space<vmem>>, vector<8x1xf32>
      %c0_9 = arith.constant 0 : index
      %c0_10 = arith.constant 0 : index
      %11 = vector.load %arg13[%c0_9, %c0_10] : memref<8x1xf32, #tpu.memory_space<vmem>>, vector<8x1xf32>
      tpu.vector_store %arg13[%c0_9, %c0_10], %10 {strides = array<i32>} : memref<8x1xf32, #tpu.memory_space<vmem>>, vector<8x1xf32>,
      %c0_11 = arith.constant 0 : index
      %c0_12 = arith.constant 0 : index
      %12 = vector.load %arg17[%c0_11, %c0_12] : memref<16x8xf32, #tpu.memory_space<vmem>>, vector<16x8xf32>
      %c0_13 = arith.constant 0 : index
      %c0_14 = arith.constant 0 : index
      %13 = vector.load %arg15[%c0_13, %c0_14] : memref<16x8xf32, #tpu.memory_space<vmem>>, vector<16x8xf32>
      tpu.vector_store %arg15[%c0_13, %c0_14], %12 {strides = array<i32>} : memref<16x8xf32, #tpu.memory_space<vmem>>, vector<16x8xf32>,
    } else {
    }
    return
  }
  func.func @transform_0(%arg0: i32, %arg1: i32) -> (i32, i32) {
    %c0_i32 = arith.constant 0 : i32
    %c0_i32_0 = arith.constant 0 : i32
    return %arg0, %c0_i32 : i32, i32
  }
  func.func @transform_1(%arg0: i32, %arg1: i32) -> (i32, i32) {
    %c0_i32 = arith.constant 0 : i32
    %c0_i32_0 = arith.constant 0 : i32
    return %arg0, %c0_i32 : i32, i32
  }
  func.func @transform_2(%arg0: i32, %arg1: i32) -> (i32, i32) {
    %c0_i32 = arith.constant 0 : i32
    %c0_i32_0 = arith.constant 0 : i32
    %c0_i32_1 = arith.constant 0 : i32
    return %c0_i32, %c0_i32_0 : i32, i32
  }
  func.func @transform_3(%arg0: i32, %arg1: i32) -> (i32, i32) {
    %c0_i32 = arith.constant 0 : i32
    %c0_i32_0 = arith.constant 0 : i32
    %c0_i32_1 = arith.constant 0 : i32
    return %c0_i32, %c0_i32_0 : i32, i32
  }
  func.func @transform_4(%arg0: i32, %arg1: i32) -> (i32, i32) {
    %c0_i32 = arith.constant 0 : i32
    %c0_i32_0 = arith.constant 0 : i32
    %c0_i32_1 = arith.constant 0 : i32
    return %c0_i32, %c0_i32_0 : i32, i32
  }
  func.func @transform_5(%arg0: i32, %arg1: i32) -> (i32, i32) {
    %c0_i32 = arith.constant 0 : i32
    %c0_i32_0 = arith.constant 0 : i32
    %c0_i32_1 = arith.constant 0 : i32
    return %c0_i32, %c0_i32_0 : i32, i32
  }
  func.func @transform_6(%arg0: i32, %arg1: i32) -> (i32, i32) {
    %c0_i32 = arith.constant 0 : i32
    %c0_i32_0 = arith.constant 0 : i32
    %c0_i32_1 = arith.constant 0 : i32
    return %c0_i32, %c0_i32_0 : i32, i32
  }
  func.func @transform_7(%arg0: i32, %arg1: i32) -> (i32, i32) {
    %c0_i32 = arith.constant 0 : i32
    %c0_i32_0 = arith.constant 0 : i32
    %c0_i32_1 = arith.constant 0 : i32
    return %c0_i32, %c0_i32_0 : i32, i32
  }
  func.func @transform_8(%arg0: i32, %arg1: i32) -> (i32, i32) {
    %c0_i32 = arith.constant 0 : i32
    %c0_i32_0 = arith.constant 0 : i32
    %c0_i32_1 = arith.constant 0 : i32
    return %c0_i32, %c0_i32_0 : i32, i32
  }
  func.func @transform_9(%arg0: i32, %arg1: i32) -> (i32, i32) {
    %c0_i32 = arith.constant 0 : i32
    %c0_i32_0 = arith.constant 0 : i32
    %c0_i32_1 = arith.constant 0 : i32
    return %c0_i32, %c0_i32_0 : i32, i32
  }
  func.func @transform_10(%arg0: i32, %arg1: i32) -> (i32, i32) {
    %c0_i32 = arith.constant 0 : i32
    %c0_i32_0 = arith.constant 0 : i32
    return %c0_i32, %arg1 : i32, i32
  }
  func.func @transform_11(%arg0: i32, %arg1: i32) -> (i32, i32) {
    %c0_i32 = arith.constant 0 : i32
    %c0_i32_0 = arith.constant 0 : i32
    return %arg0, %c0_i32 : i32, i32
  }
  func.func @transform_12(%arg0: i32, %arg1: i32) -> (i32, i32) {
    %c0_i32 = arith.constant 0 : i32
    return %arg0, %arg1 : i32, i32
  }
  func.func @transform_13(%arg0: i32, %arg1: i32) -> (i32, i32) {
    %c0_i32 = arith.constant 0 : i32
    %c0_i32_0 = arith.constant 0 : i32
    return %c0_i32, %arg0 : i32, i32
  }
}

</mosaic_0001>

<llo_original>
// kernel: moco_forward.1
$region0: #{moco_forward.1}
  #allocation0 [shape = 'u32[]', space=smem, size = 0x4, offset = 0x4, fixed_abs, tag = 'smem constant byte address 0x4 - core index']
  #allocation1 [shape = 'u32[72,128]{1,0:T(1,128)}', space=vmem, size = 0x9000, scoped, tag = 'internal scratch']
  #allocation2 [shape = 'f32[8,16]{1,0:T(8,128)}', space=vmem, size = 0x1000, scoped, tag = 'scratch operand']
  #allocation3 [shape = 'f32[16,8]{1,0:T(8,128)}', space=vmem, size = 0x2000, scoped, tag = 'scratch operand']
  #allocation4 [shape = 'f32[8,1]{1,0:T(8,128)}', space=vmem, size = 0x1000, scoped, tag = 'scratch operand']
  %s0 = inlined_call_operand.vmem [shape: f32[8,32], index: 0, kind: input, shape index: {}]
  %s1 = inlined_call_operand.vmem [shape: f32[8,32], index: 1, kind: input, shape index: {}]
  %s2 = inlined_call_operand.vmem [shape: f32[32,32], index: 2, kind: input, shape index: {}]
  %s3 = inlined_call_operand.vmem [shape: f32[1,32], index: 3, kind: input, shape index: {}]
  %s4 = inlined_call_operand.vmem [shape: f32[32,16], index: 4, kind: input, shape index: {}]
  %s5 = inlined_call_operand.vmem [shape: f32[1,16], index: 5, kind: input, shape index: {}]
  %s6 = inlined_call_operand.vmem [shape: f32[32,32], index: 6, kind: input, shape index: {}]
  %s7 = inlined_call_operand.vmem [shape: f32[1,32], index: 7, kind: input, shape index: {}]
  %s8 = inlined_call_operand.vmem [shape: f32[32,16], index: 8, kind: input, shape index: {}]
  %s9 = inlined_call_operand.vmem [shape: f32[1,16], index: 9, kind: input, shape index: {}]
  %s10 = inlined_call_operand.vmem [shape: f32[16,256], index: 10, kind: input, shape index: {}]
  %s11 = inlined_call_operand.vmem [shape: f32[8,1], index: 11, kind: output, shape index: {0}]
  %s12 = inlined_call_operand.hbm [shape: f32[8,256], index: 12, kind: output, shape index: {1}]
  %s13 = inlined_call_operand.vmem [shape: f32[16,8], index: 13, kind: output, shape index: {2}]
  %14 = xla_tuple %s11, %s12, %s13
  %s15 = sld [smem:[#allocation0]]
  $region139: #{moco_forward.1} parent=0
    _
  %s17 = ssub.s32 1, %s15
  %s18 = scalar_select 0, %s17, %s15
  $region1: #{moco_forward.1} parent=0
    #allocation5 [shape = 'u8[16384]{0}', space=vmem, size = 0x4000, scoped, tag = 'input window, operand 10']
    #allocation6 [shape = 'u8[8192]{0}', space=vmem, size = 0x2000, scoped, tag = 'output window, operand 1']
    #allocation7 [shape = 's32[2]{0}', space=sflag, size = 0x8, scoped, tag = 'scoped memory for moco_forward.1']
    %19 = vsyncpa [#allocation7], 0
    %s20 = scalar_lea.sflag [#allocation7], 1
    %21 = vsyncpa %s20, 0
    loop: start=0, step=1, limit=4
    $region2: #{moco_forward.1} parent=1 // loop_pre_header
      _
    $region3: #{moco_forward.1} parent=1 // loop_header
      %s23 = sphi 0, %s27
      %p24 = scmp.ge.s32.totalorder %s23, 4
      %s30 = sphi 0, %s42
      %s31 = sphi 0, %s38
      %s32 = sphi 0, %s30
      %s33 = sphi 0, %s31
      %s34 = sphi 0, %s32
      %s35 = sphi 0, %s33
      %s45 = sphi 0, %s47
      %s48 = sphi 0, %s45
      %s49 = sphi 0, %s48
      %s65 = sphi 0, %s49
      %s71 = sphi 0, %s73
      %s74 = sphi 0, %s71
      %s75 = sphi 0, %s74
      %s91 = sphi 0, %s75
      %s95 = sphi 0, %s95
      %s97 = sphi 0, %s95
      %s98 = sphi 0, %s97
      %s112 = sphi 0, %s98
      %s116 = sphi 0, %s116
      %s118 = sphi 0, %s116
      %s119 = sphi 0, %s118
      %s133 = sphi 0, %s119
      %s137 = sphi 0, %s137
      %s139 = sphi 0, %s137
      %s140 = sphi 0, %s139
      %s154 = sphi 0, %s140
      %s158 = sphi 0, %s158
      %s160 = sphi 0, %s158
      %s161 = sphi 0, %s160
      %s175 = sphi 0, %s161
      %s179 = sphi 0, %s179
      %s181 = sphi 0, %s179
      %s182 = sphi 0, %s181
      %s196 = sphi 0, %s182
      %s200 = sphi 0, %s200
      %s202 = sphi 0, %s200
      %s203 = sphi 0, %s202
      %s217 = sphi 0, %s203
      %s221 = sphi 0, %s221
      %s223 = sphi 0, %s221
      %s224 = sphi 0, %s223
      %s238 = sphi 0, %s224
      %s242 = sphi 0, %s242
      %s244 = sphi 0, %s242
      %s245 = sphi 0, %s244
      %s259 = sphi 0, %s245
      %s265 = sphi 0, %s267
      %s268 = sphi 0, %s265
      %s269 = sphi 0, %s268
      %s285 = sphi 0, %s269
      %s291 = sphi 0, %s293
      %s294 = sphi 0, %s291
      %s295 = sphi 0, %s294
      %s311 = sphi 0, %s295
      %s319 = sphi 0, %s321
      %s322 = sphi 0, %s319
      %s323 = sphi 0, %s322
      %s339 = sphi 0, %s323
      %s345 = sphi 0, %s347
      %s348 = sphi 0, %s345
      %s349 = sphi 0, %s348
      %s365 = sphi 0, %s349
    $region4: #{moco_forward.1} parent=1 // loop_header_branch
      %26 = sbr.rel (%p24) target = $region8
    $region5: #{moco_forward.1} parent=1 // loop_body
      %s28 = ssub.s32 %s23, 1
      %s29 = ssub.s32 %s23, 2
      %s36 = sadd.s32 1, %s31
      %p37 = scmp.ge.s32.totalorder %s36, 2
      %s38 = scalar_select %p37, 0, %s36
      %s39 = sadd.s32 1, %s30
      %s40 = scalar_select %p37, %s39, %s30
      %p41 = scmp.ge.s32.totalorder %s40, 1
      %s42 = scalar_select %p41, 0, %s40
      %s43 = ssub.s32 %s30, %s42
      %p44 = scmp.eq.s32.totalorder %s43, 0
      %s46 = sadd.s32 %s45, 1
      %s47 = scalar_select %p44, %s45, %s46
      %p50 = pneg %p44
      %p51 = scmp.eq.s32.totalorder %s23, 1
      %p52 = por %p50, %p51
      %p53 = scmp.ne.s32.totalorder %s45, %s48
      %p54 = scmp.eq.s32.totalorder %s23, 0
      %p55 = por %p53, %p54
      %p56 = scmp.ne.s32.totalorder %s45, %s48
      %p57 = scmp.eq.s32.totalorder %s28, 1
      %p58 = por %p56, %p57
      %p59 = scmp.ne.s32.totalorder %s48, %s49
      %p60 = scmp.eq.s32.totalorder %s28, 0
      %p61 = por %p59, %p60
      %p62 = scmp.ne.s32.totalorder %s48, %s49
      %p63 = scmp.eq.s32.totalorder %s29, 1
      %p64 = por %p62, %p63
      %p66 = scmp.ne.s32.totalorder %s49, %s65
      %p67 = scmp.eq.s32.totalorder %s29, 0
      %p68 = por %p66, %p67
      %s69 = ssub.s32 %s30, %s42
      %p70 = scmp.eq.s32.totalorder %s69, 0
      %s72 = sadd.s32 %s71, 1
      %s73 = scalar_select %p70, %s71, %s72
      %p76 = pneg %p70
      %p77 = scmp.eq.s32.totalorder %s23, 1
      %p78 = por %p76, %p77
      %p79 = scmp.ne.s32.totalorder %s71, %s74
      %p80 = scmp.eq.s32.totalorder %s23, 0
      %p81 = por %p79, %p80
      %p82 = scmp.ne.s32.totalorder %s71, %s74
      %p83 = scmp.eq.s32.totalorder %s28, 1
      %p84 = por %p82, %p83
      %p85 = scmp.ne.s32.totalorder %s74, %s75
      %p86 = scmp.eq.s32.totalorder %s28, 0
      %p87 = por %p85, %p86
      %p88 = scmp.ne.s32.totalorder %s74, %s75
      %p89 = scmp.eq.s32.totalorder %s29, 1
      %p90 = por %p88, %p89
      %p92 = scmp.ne.s32.totalorder %s75, %s91
      %p93 = scmp.eq.s32.totalorder %s29, 0
      %p94 = por %p92, %p93
      %s96 = sadd.s32 %s95, 1
      %p99 = scmp.eq.s32.totalorder %s23, 1
      %p100 = scmp.ne.s32.totalorder %s95, %s97
      %p101 = scmp.eq.s32.totalorder %s23, 0
      %p102 = por %p100, %p101
      %p103 = scmp.ne.s32.totalorder %s95, %s97
      %p104 = scmp.eq.s32.totalorder %s28, 1
      %p105 = por %p103, %p104
      %p106 = scmp.ne.s32.totalorder %s97, %s98
      %p107 = scmp.eq.s32.totalorder %s28, 0
      %p108 = por %p106, %p107
      %p109 = scmp.ne.s32.totalorder %s97, %s98
      %p110 = scmp.eq.s32.totalorder %s29, 1
      %p111 = por %p109, %p110
      %p113 = scmp.ne.s32.totalorder %s98, %s112
      %p114 = scmp.eq.s32.totalorder %s29, 0
      %p115 = por %p113, %p114
      %s117 = sadd.s32 %s116, 1
      %p120 = scmp.eq.s32.totalorder %s23, 1
      %p121 = scmp.ne.s32.totalorder %s116, %s118
      %p122 = scmp.eq.s32.totalorder %s23, 0
      %p123 = por %p121, %p122
      %p124 = scmp.ne.s32.totalorder %s116, %s118
      %p125 = scmp.eq.s32.totalorder %s28, 1
      %p126 = por %p124, %p125
      %p127 = scmp.ne.s32.totalorder %s118, %s119
      %p128 = scmp.eq.s32.totalorder %s28, 0
      %p129 = por %p127, %p128
      %p130 = scmp.ne.s32.totalorder %s118, %s119
      %p131 = scmp.eq.s32.totalorder %s29, 1
      %p132 = por %p130, %p131
      %p134 = scmp.ne.s32.totalorder %s119, %s133
      %p135 = scmp.eq.s32.totalorder %s29, 0
      %p136 = por %p134, %p135
      %s138 = sadd.s32 %s137, 1
      %p141 = scmp.eq.s32.totalorder %s23, 1
      %p142 = scmp.ne.s32.totalorder %s137, %s139
      %p143 = scmp.eq.s32.totalorder %s23, 0
      %p144 = por %p142, %p143
      %p145 = scmp.ne.s32.totalorder %s137, %s139
      %p146 = scmp.eq.s32.totalorder %s28, 1
      %p147 = por %p145, %p146
      %p148 = scmp.ne.s32.totalorder %s139, %s140
      %p149 = scmp.eq.s32.totalorder %s28, 0
      %p150 = por %p148, %p149
      %p151 = scmp.ne.s32.totalorder %s139, %s140
      %p152 = scmp.eq.s32.totalorder %s29, 1
      %p153 = por %p151, %p152
      %p155 = scmp.ne.s32.totalorder %s140, %s154
      %p156 = scmp.eq.s32.totalorder %s29, 0
      %p157 = por %p155, %p156
      %s159 = sadd.s32 %s158, 1
      %p162 = scmp.eq.s32.totalorder %s23, 1
      %p163 = scmp.ne.s32.totalorder %s158, %s160
      %p164 = scmp.eq.s32.totalorder %s23, 0
      %p165 = por %p163, %p164
      %p166 = scmp.ne.s32.totalorder %s158, %s160
      %p167 = scmp.eq.s32.totalorder %s28, 1
      %p168 = por %p166, %p167
      %p169 = scmp.ne.s32.totalorder %s160, %s161
      %p170 = scmp.eq.s32.totalorder %s28, 0
      %p171 = por %p169, %p170
      %p172 = scmp.ne.s32.totalorder %s160, %s161
      %p173 = scmp.eq.s32.totalorder %s29, 1
      %p174 = por %p172, %p173
      %p176 = scmp.ne.s32.totalorder %s161, %s175
      %p177 = scmp.eq.s32.totalorder %s29, 0
      %p178 = por %p176, %p177
      %s180 = sadd.s32 %s179, 1
      %p183 = scmp.eq.s32.totalorder %s23, 1
      %p184 = scmp.ne.s32.totalorder %s179, %s181
      %p185 = scmp.eq.s32.totalorder %s23, 0
      %p186 = por %p184, %p185
      %p187 = scmp.ne.s32.totalorder %s179, %s181
      %p188 = scmp.eq.s32.totalorder %s28, 1
      %p189 = por %p187, %p188
      %p190 = scmp.ne.s32.totalorder %s181, %s182
      %p191 = scmp.eq.s32.totalorder %s28, 0
      %p192 = por %p190, %p191
      %p193 = scmp.ne.s32.totalorder %s181, %s182
      %p194 = scmp.eq.s32.totalorder %s29, 1
      %p195 = por %p193, %p194
      %p197 = scmp.ne.s32.totalorder %s182, %s196
      %p198 = scmp.eq.s32.totalorder %s29, 0
      %p199 = por %p197, %p198
      %s201 = sadd.s32 %s200, 1
      %p204 = scmp.eq.s32.totalorder %s23, 1
      %p205 = scmp.ne.s32.totalorder %s200, %s202
      %p206 = scmp.eq.s32.totalorder %s23, 0
      %p207 = por %p205, %p206
      %p208 = scmp.ne.s32.totalorder %s200, %s202
      %p209 = scmp.eq.s32.totalorder %s28, 1
      %p210 = por %p208, %p209
      %p211 = scmp.ne.s32.totalorder %s202, %s203
      %p212 = scmp.eq.s32.totalorder %s28, 0
      %p213 = por %p211, %p212
      %p214 = scmp.ne.s32.totalorder %s202, %s203
      %p215 = scmp.eq.s32.totalorder %s29, 1
      %p216 = por %p214, %p215
      %p218 = scmp.ne.s32.totalorder %s203, %s217
      %p219 = scmp.eq.s32.totalorder %s29, 0
      %p220 = por %p218, %p219
      %s222 = sadd.s32 %s221, 1
      %p225 = scmp.eq.s32.totalorder %s23, 1
      %p226 = scmp.ne.s32.totalorder %s221, %s223
      %p227 = scmp.eq.s32.totalorder %s23, 0
      %p228 = por %p226, %p227
      %p229 = scmp.ne.s32.totalorder %s221, %s223
      %p230 = scmp.eq.s32.totalorder %s28, 1
      %p231 = por %p229, %p230
      %p232 = scmp.ne.s32.totalorder %s223, %s224
      %p233 = scmp.eq.s32.totalorder %s28, 0
      %p234 = por %p232, %p233
      %p235 = scmp.ne.s32.totalorder %s223, %s224
      %p236 = scmp.eq.s32.totalorder %s29, 1
      %p237 = por %p235, %p236
      %p239 = scmp.ne.s32.totalorder %s224, %s238
      %p240 = scmp.eq.s32.totalorder %s29, 0
      %p241 = por %p239, %p240
      %s243 = sadd.s32 %s242, 1
      %p246 = scmp.eq.s32.totalorder %s23, 1
      %p247 = scmp.ne.s32.totalorder %s242, %s244
      %p248 = scmp.eq.s32.totalorder %s23, 0
      %p249 = por %p247, %p248
      %p250 = scmp.ne.s32.totalorder %s242, %s244
      %p251 = scmp.eq.s32.totalorder %s28, 1
      %p252 = por %p250, %p251
      %p253 = scmp.ne.s32.totalorder %s244, %s245
      %p254 = scmp.eq.s32.totalorder %s28, 0
      %p255 = por %p253, %p254
      %p256 = scmp.ne.s32.totalorder %s244, %s245
      %p257 = scmp.eq.s32.totalorder %s29, 1
      %p258 = por %p256, %p257
      %p260 = scmp.ne.s32.totalorder %s245, %s259
      %p261 = scmp.eq.s32.totalorder %s29, 0
      %p262 = por %p260, %p261
      %s263 = ssub.s32 %s31, %s38
      %p264 = scmp.eq.s32.totalorder %s263, 0
      %s266 = sadd.s32 %s265, 1
      %s267 = scalar_select %p264, %s265, %s266
      %p270 = pneg %p264
      %p271 = scmp.eq.s32.totalorder %s23, 1
      %p272 = por %p270, %p271
      %p273 = scmp.ne.s32.totalorder %s265, %s268
      %p274 = scmp.eq.s32.totalorder %s23, 0
      %p275 = por %p273, %p274
      %p276 = scmp.ne.s32.totalorder %s265, %s268
      %p277 = scmp.eq.s32.totalorder %s28, 1
      %p278 = por %p276, %p277
      %p279 = scmp.ne.s32.totalorder %s268, %s269
      %p280 = scmp.eq.s32.totalorder %s28, 0
      %p281 = por %p279, %p280
      %p282 = scmp.ne.s32.totalorder %s268, %s269
      %p283 = scmp.eq.s32.totalorder %s29, 1
      %p284 = por %p282, %p283
      %p286 = scmp.ne.s32.totalorder %s269, %s285
      %p287 = scmp.eq.s32.totalorder %s29, 0
      %p288 = por %p286, %p287
      %s289 = ssub.s32 %s30, %s42
      %p290 = scmp.eq.s32.totalorder %s289, 0
      %s292 = sadd.s32 %s291, 1
      %s293 = scalar_select %p290, %s291, %s292
      %p296 = pneg %p290
      %p297 = scmp.eq.s32.totalorder %s23, 1
      %p298 = por %p296, %p297
      %p299 = scmp.ne.s32.totalorder %s291, %s294
      %p300 = scmp.eq.s32.totalorder %s23, 0
      %p301 = por %p299, %p300
      %p302 = scmp.ne.s32.totalorder %s291, %s294
      %p303 = scmp.eq.s32.totalorder %s28, 1
      %p304 = por %p302, %p303
      %p305 = scmp.ne.s32.totalorder %s294, %s295
      %p306 = scmp.eq.s32.totalorder %s28, 0
      %p307 = por %p305, %p306
      %p308 = scmp.ne.s32.totalorder %s294, %s295
      %p309 = scmp.eq.s32.totalorder %s29, 1
      %p310 = por %p308, %p309
      %p312 = scmp.ne.s32.totalorder %s295, %s311
      %p313 = scmp.eq.s32.totalorder %s29, 0
      %p314 = por %p312, %p313
      %s315 = ssub.s32 %s30, %s42
      %s316 = ssub.s32 %s31, %s38
      %s317 = sor.u32 %s315, %s316
      %p318 = scmp.eq.s32.totalorder %s317, 0
      %s320 = sadd.s32 %s319, 1
      %s321 = scalar_select %p318, %s319, %s320
      %p324 = pneg %p318
      %p325 = scmp.eq.s32.totalorder %s23, 1
      %p326 = por %p324, %p325
      %p327 = scmp.ne.s32.totalorder %s319, %s322
      %p328 = scmp.eq.s32.totalorder %s23, 0
      %p329 = por %p327, %p328
      %p330 = scmp.ne.s32.totalorder %s319, %s322
      %p331 = scmp.eq.s32.totalorder %s28, 1
      %p332 = por %p330, %p331
      %p333 = scmp.ne.s32.totalorder %s322, %s323
      %p334 = scmp.eq.s32.totalorder %s28, 0
      %p335 = por %p333, %p334
      %p336 = scmp.ne.s32.totalorder %s322, %s323
      %p337 = scmp.eq.s32.totalorder %s29, 1
      %p338 = por %p336, %p337
      %p340 = scmp.ne.s32.totalorder %s323, %s339
      %p341 = scmp.eq.s32.totalorder %s29, 0
      %p342 = por %p340, %p341
      %s343 = ssub.s32 %s30, %s42
      %p344 = scmp.eq.s32.totalorder %s343, 0
      %s346 = sadd.s32 %s345, 1
      %s347 = scalar_select %p344, %s345, %s346
      %p350 = pneg %p344
      %p351 = scmp.eq.s32.totalorder %s23, 1
      %p352 = por %p350, %p351
      %p353 = scmp.ne.s32.totalorder %s345, %s348
      %p354 = scmp.eq.s32.totalorder %s23, 0
      %p355 = por %p353, %p354
      %p356 = scmp.ne.s32.totalorder %s345, %s348
      %p357 = scmp.eq.s32.totalorder %s28, 1
      %p358 = por %p356, %p357
      %p359 = scmp.ne.s32.totalorder %s348, %s349
      %p360 = scmp.eq.s32.totalorder %s28, 0
      %p361 = por %p359, %p360
      %p362 = scmp.ne.s32.totalorder %s348, %s349
      %p363 = scmp.eq.s32.totalorder %s29, 1
      %p364 = por %p362, %p363
      %p366 = scmp.ne.s32.totalorder %s349, %s365
      %p367 = scmp.eq.s32.totalorder %s29, 0
      %p368 = por %p366, %p367
      %p369 = scmp.le.s32.totalorder 1, %s23
      %p370 = scmp.lt.s32.totalorder %s23, 3
      %p371 = pnand %p369, %p370
      %p372 = pneg %p371
      // Predicated region
      $region9: #{moco_forward.1} parent=5 // pred_check
        _
      $region10: #{moco_forward.1} parent=5 // pred_check_branch
        %374 = sbr.rel (%p371) target = $region12
      $region11: #{moco_forward.1} parent=5 // pred_region
        %s375 = ssub.s32 %s23, 1
        // Predicated region
        $region13: #{moco_forward.1} parent=11 // pred_check
          %p376 = pneg %p61
        $region14: #{moco_forward.1} parent=11 // pred_check_branch
          %378 = sbr.rel (%p376) target = $region16
        $region15: #{moco_forward.1} parent=11 // pred_region
          %p379 = scmp.lt.s32.totalorder %s32, 0
          %s380 = scalar_select %p379, %s32, 0
          %s381 = smul.addr %s380, 8
          %s382 = scalar_lea.vmem %s0, %s381
        $region16: #{moco_forward.1} parent=11 // pred_fallthru
          _
        // Predicated region
        $region17: #{moco_forward.1} parent=11 // pred_check
          %p383 = pneg %p87
        $region18: #{moco_forward.1} parent=11 // pred_check_branch
          %385 = sbr.rel (%p383) target = $region20
        $region19: #{moco_forward.1} parent=11 // pred_region
          %p386 = scmp.lt.s32.totalorder %s32, 0
          %s387 = scalar_select %p386, %s32, 0
          %s388 = smul.addr %s387, 8
          %s389 = scalar_lea.vmem %s1, %s388
        $region20: #{moco_forward.1} parent=11 // pred_fallthru
          _
        // Predicated region
        $region21: #{moco_forward.1} parent=11 // pred_check
          %p390 = pneg %p108
        $region22: #{moco_forward.1} parent=11 // pred_check_branch
          %392 = sbr.rel (%p390) target = $region24
        $region23: #{moco_forward.1} parent=11 // pred_region
          _
        $region24: #{moco_forward.1} parent=11 // pred_fallthru
          _
        // Predicated region
        $region25: #{moco_forward.1} parent=11 // pred_check
          %p393 = pneg %p129
        $region26: #{moco_forward.1} parent=11 // pred_check_branch
          %395 = sbr.rel (%p393) target = $region28
        $region27: #{moco_forward.1} parent=11 // pred_region
          _
        $region28: #{moco_forward.1} parent=11 // pred_fallthru
          _
        // Predicated region
        $region29: #{moco_forward.1} parent=11 // pred_check
          %p396 = pneg %p150
        $region30: #{moco_forward.1} parent=11 // pred_check_branch
          %398 = sbr.rel (%p396) target = $region32
        $region31: #{moco_forward.1} parent=11 // pred_region
          _
        $region32: #{moco_forward.1} parent=11 // pred_fallthru
          _
        // Predicated region
        $region33: #{moco_forward.1} parent=11 // pred_check
          %p399 = pneg %p171
        $region34: #{moco_forward.1} parent=11 // pred_check_branch
          %401 = sbr.rel (%p399) target = $region36
        $region35: #{moco_forward.1} parent=11 // pred_region
          _
        $region36: #{moco_forward.1} parent=11 // pred_fallthru
          _
        // Predicated region
        $region37: #{moco_forward.1} parent=11 // pred_check
          %p402 = pneg %p192
        $region38: #{moco_forward.1} parent=11 // pred_check_branch
          %404 = sbr.rel (%p402) target = $region40
        $region39: #{moco_forward.1} parent=11 // pred_region
          _
        $region40: #{moco_forward.1} parent=11 // pred_fallthru
          _
        // Predicated region
        $region41: #{moco_forward.1} parent=11 // pred_check
          %p405 = pneg %p213
        $region42: #{moco_forward.1} parent=11 // pred_check_branch
          %407 = sbr.rel (%p405) target = $region44
        $region43: #{moco_forward.1} parent=11 // pred_region
          _
        $region44: #{moco_forward.1} parent=11 // pred_fallthru
          _
        // Predicated region
        $region45: #{moco_forward.1} parent=11 // pred_check
          %p408 = pneg %p234
        $region46: #{moco_forward.1} parent=11 // pred_check_branch
          %410 = sbr.rel (%p408) target = $region48
        $region47: #{moco_forward.1} parent=11 // pred_region
          _
        $region48: #{moco_forward.1} parent=11 // pred_fallthru
          _
        // Predicated region
        $region49: #{moco_forward.1} parent=11 // pred_check
          %p411 = pneg %p255
        $region50: #{moco_forward.1} parent=11 // pred_check_branch
          %413 = sbr.rel (%p411) target = $region52
        $region51: #{moco_forward.1} parent=11 // pred_region
          _
        $region52: #{moco_forward.1} parent=11 // pred_fallthru
          _
      $region12: #{moco_forward.1} parent=5 // pred_fallthru
        _
      %p414 = scmp.lt.s32.totalorder %s23, 2
      // Predicated region
      $region53: #{moco_forward.1} parent=5 // pred_check
        %p415 = pneg %p414
      $region54: #{moco_forward.1} parent=5 // pred_check_branch
        %417 = sbr.rel (%p415) target = $region56
      $region55: #{moco_forward.1} parent=5 // pred_region
        // Predicated region
        $region57: #{moco_forward.1} parent=55 // pred_check
          %p418 = pneg %p275
        $region58: #{moco_forward.1} parent=55 // pred_check_branch
          %420 = sbr.rel (%p418) target = $region60
        $region59: #{moco_forward.1} parent=55 // pred_region
          %s421 = sand.u32 %s265, 1
          %s422 = sand.u32 %s265, 1
          %s423 = smul.addr %s422, 16
          %s424 = scalar_lea.vmem [#allocation5], %s423
          %s425 = smul.addr %s31, 8
          %s426 = scalar_lea.vmem %s10, %s425
          // Predicated region
          $region61: #{moco_forward.1} parent=59 // pred_check
            _
          $region62: #{moco_forward.1} parent=59 // pred_check_branch
            %428 = sbr.rel (0) target = $region64
          $region63: #{moco_forward.1} parent=59 // pred_region
            // Predicated region
            $region65: #{moco_forward.1} parent=63 // pred_check
              _
            $region66: #{moco_forward.1} parent=63 // pred_check_branch
              %430 = sbr.rel (0) target = $region68
            $region67: #{moco_forward.1} parent=63 // pred_region
              // Predicated region
              $region80: #{moco_forward.1} parent=67 // pred_check
                _
              $region81: #{moco_forward.1} parent=67 // pred_check_branch
                %448 = sbr.rel (0) target = $region83
              $region82: #{moco_forward.1} parent=67 // pred_region
                loop: start=0, step=1, limit=1
                $region84: #{moco_forward.1} parent=82 // loop_pre_header
                  _
                $region85: #{moco_forward.1} parent=82 // loop_header
                  %s450 = sphi 0, %s454
                  %p451 = scmp.ge.s32.totalorder %s450, 1
                  %s455 = sphi %s426, %s426
                  %s456 = sphi %s424, %s424
                $region86: #{moco_forward.1} parent=82 // loop_header_branch
                  %453 = sbr.rel (%p451) target = $region90
                $region87: #{moco_forward.1} parent=82 // loop_body
                  %v457 = vld [vmem:[%s455] sm:$0xff]
                  %458 = vst [vmem:[%s456] sm:$0xff] %v457
                  %v459 = vld [vmem:[%s455 + $0x10] sm:$0xff]
                  %460 = vst [vmem:[%s456 + $0x8] sm:$0xff] %v459
                $region88: #{moco_forward.1} parent=82 // loop_footer
                  %s454 = sadd.s32 1, %s450
                $region89: #{moco_forward.1} parent=82 // loop_footer_branch
                  %449 = sbr.rel target = $region85
                $region90: #{moco_forward.1} parent=82 // loop_exit
                  _
              $region83: #{moco_forward.1} parent=67 // pred_fallthru
                _
              // Predicated region
              $region91: #{moco_forward.1} parent=67 // pred_check
                _
              $region92: #{moco_forward.1} parent=67 // pred_check_branch
                %462 = sbr.rel target = $region94
              $region93: #{moco_forward.1} parent=67 // pred_region
                _
              $region94: #{moco_forward.1} parent=67 // pred_fallthru
                _
            $region68: #{moco_forward.1} parent=63 // pred_fallthru
              _
            // Predicated region
            $region69: #{moco_forward.1} parent=63 // pred_check
              _
            $region70: #{moco_forward.1} parent=63 // pred_check_branch
              %432 = sbr.rel target = $region72
            $region71: #{moco_forward.1} parent=63 // pred_region
              %s434 = ssub.s32 256, 1
              loop: start=0, step=1, limit=1
              $region73: #{moco_forward.1} parent=71 // loop_pre_header
                _
              $region74: #{moco_forward.1} parent=71 // loop_header
                %s436 = sphi 0, %s440
                %p437 = scmp.ge.s32.totalorder %s436, 1
                %s441 = sphi %s426, %s426
                %s442 = sphi %s424, %s424
              $region75: #{moco_forward.1} parent=71 // loop_header_branch
                %439 = sbr.rel (%p437) target = $region79
              $region76: #{moco_forward.1} parent=71 // loop_body
                %v443 = vld [vmem:[%s441] sm:%s434]
                %444 = vst [vmem:[%s442] sm:%s434] %v443
                %v445 = vld [vmem:[%s441 + $0x10] sm:%s434]
                %446 = vst [vmem:[%s442 + $0x8] sm:%s434] %v445
              $region77: #{moco_forward.1} parent=71 // loop_footer
                %s440 = sadd.s32 1, %s436
              $region78: #{moco_forward.1} parent=71 // loop_footer_branch
                %435 = sbr.rel target = $region74
              $region79: #{moco_forward.1} parent=71 // loop_exit
                _
            $region72: #{moco_forward.1} parent=63 // pred_fallthru
              _
          $region64: #{moco_forward.1} parent=59 // pred_fallthru
            _
          %463 = vnop
        $region60: #{moco_forward.1} parent=55 // pred_fallthru
          _
      $region56: #{moco_forward.1} parent=5 // pred_fallthru
        _
      %p464 = scmp.le.s32.totalorder 1, %s23
      %p465 = scmp.lt.s32.totalorder %s23, 3
      %p466 = pnand %p464, %p465
      %p467 = pneg %p466
      // Predicated region
      $region95: #{moco_forward.1} parent=5 // pred_check
        _
      $region96: #{moco_forward.1} parent=5 // pred_check_branch
        %469 = sbr.rel (%p466) target = $region98
      $region97: #{moco_forward.1} parent=5 // pred_region
        %s470 = ssub.s32 %s23, 1
        %s471 = sand.u32 %s268, 1
        %s472 = sand.u32 %s268, 1
        %s473 = smul.addr %s472, 16
        %s474 = scalar_lea.vmem [#allocation5], %s473
        // Predicated region
        $region99: #{moco_forward.1} parent=97 // pred_check
          %p475 = pneg %p281
        $region100: #{moco_forward.1} parent=97 // pred_check_branch
          %477 = sbr.rel (%p475) target = $region102
        $region101: #{moco_forward.1} parent=97 // pred_region
          _
        $region102: #{moco_forward.1} parent=97 // pred_fallthru
          _
        %p478 = scmp.lt.s32.totalorder %s32, 0
        %s479 = scalar_select %p478, %s32, 0
        %s480 = smul.addr %s479, 8
        %s481 = scalar_lea.vmem %s0, %s480
        %p482 = pneg %p61
        %p483 = pneg %p58
        %p484 = scmp.lt.s32.totalorder %s32, 0
        %s485 = scalar_select %p484, %s32, 0
        %s486 = smul.addr %s485, 8
        %s487 = scalar_lea.vmem %s1, %s486
        %p488 = pneg %p87
        %p489 = pneg %p84
        %p490 = pneg %p108
        %p491 = pneg %p105
        %p492 = pneg %p129
        %p493 = pneg %p126
        %p494 = pneg %p150
        %p495 = pneg %p147
        %p496 = pneg %p171
        %p497 = pneg %p168
        %p498 = pneg %p192
        %p499 = pneg %p189
        %p500 = pneg %p213
        %p501 = pneg %p210
        %p502 = pneg %p234
        %p503 = pneg %p231
        %p504 = pneg %p255
        %p505 = pneg %p252
        %s506 = sand.u32 %s268, 1
        %s507 = sand.u32 %s268, 1
        %s508 = smul.addr %s507, 16
        %s509 = scalar_lea.vmem [#allocation5], %s508
        %p510 = pneg %p281
        %p511 = pneg %p278
        %p512 = pneg %p307
        %p513 = pneg %p304
        %p514 = scmp.lt.s32.totalorder %s32, 0
        %s515 = scalar_select %p514, %s32, 0
        %s516 = smul.addr %s515, 8
        %s517 = scalar_lea.vmem %s11, %s516
        %p518 = pneg %p335
        %p519 = pneg %p332
        %s520 = sand.u32 %s322, 1
        %s521 = scalar_lea.sflag [#allocation7], %s520
        %s522 = sand.u32 %s322, 1
        %s523 = smul.addr %s522, 8
        %s524 = scalar_lea.vmem [#allocation6], %s523
        %p525 = pneg %p361
        %p526 = pneg %p358
        %p527 = scmp.lt.s32.totalorder %s32, 0
        %s528 = scalar_select %p527, %s32, 0
        %s529 = smul.addr %s528, 8
        %s530 = scalar_lea.vmem %s13, %s529
        %p531 = scmp.lt.s32.totalorder %s32, 0
        %s532 = scalar_select %p531, %s32, 0
        %s533 = smul.addr %s532, 8
        %s534 = scalar_lea.vmem %s0, %s533
        %p535 = scmp.lt.s32.totalorder %s32, 0
        %s536 = scalar_select %p535, %s32, 0
        %s537 = smul.addr %s536, 8
        %s538 = scalar_lea.vmem %s1, %s537
        %p539 = scmp.lt.s32.totalorder %s32, 0
        %s540 = scalar_select %p539, %s32, 0
        %s541 = smul.addr %s540, 8
        %s542 = scalar_lea.vmem %s11, %s541
        %p543 = scmp.lt.s32.totalorder %s32, 0
        %s544 = scalar_select %p543, %s32, 0
        %s545 = smul.addr %s544, 8
        %s546 = scalar_lea.vmem %s13, %s545
        %p547 = scmp.eq.s32.totalorder %s33, 0
        // Predicated region
        $region103: #{moco_forward.1} parent=97 // pred_check
          %p548 = pneg %p547
        $region104: #{moco_forward.1} parent=97 // pred_check_branch
          %550 = sbr.rel (%p548) target = $region106
        $region105: #{moco_forward.1} parent=97 // pred_region
          %v551 = vld [vmem:[%s534] sm:$0xff]
          %v552 = vld [vmem:[%s2] sm:$0xff]
          %v553 = vld [vmem:[%s2 + $0x8] sm:$0xff]
          %v554 = vld [vmem:[%s2 + $0x10] sm:$0xff]
          %v555 = vld [vmem:[%s2 + $0x18] sm:$0xff]
          %v556 = vld [vmem:[%s3] sm:$0x1]
          %v558 = vperm.slane %v556, 0
          %vm560 = vcmask 261120
          %v562 = vsel %vm560, %v551, 0
          %564 = vmatpush.msra.mxu0 0.0
          %565 = vmatpush.msra.mxu0 0.0
          %566 = vmatpush.msra.mxu0 0.0
          %567 = vmatpush.msra.mxu0 0.0
          %568 = vmatpush.msra.mxu0 0.0
          %569 = vmatpush.msra.mxu0 0.0
          %570 = vmatpush.msra.mxu0 0.0
          %571 = vmatpush.msra.mxu0 0.0
          %572 = vmatpush.msra.mxu0 0.0
          %573 = vmatpush.msra.mxu0 0.0
          %574 = vmatpush.msra.mxu0 0.0
          %575 = vmatpush.msra.mxu0 0.0
          %576 = vmatpush.msra.mxu0 %v555
          %577 = vmatpush.msra.mxu0 %v554
          %578 = vmatpush.msra.mxu0 %v553
          %579 = vmatpush.msra.mxu0 %v552
          %580 = vmatmul.f32.gmra.mxu0 %v562
          %v581 = vpop.f32.mrf.mxu0
          %v582 = vadd.f32 %v558, %v581
          %583 = vdwg.mxu0
          %v584 = vmax.f32 %v582, 0.0
          %v585 = vld [vmem:[%s4] sm:$0xff]
          %v586 = vld [vmem:[%s4 + $0x8] sm:$0xff]
          %v587 = vld [vmem:[%s4 + $0x10] sm:$0xff]
          %v588 = vld [vmem:[%s4 + $0x18] sm:$0xff]
          %v589 = vld [vmem:[%s5] sm:$0x1]
          %v591 = vperm.slane %v589, 0
          %v594 = vsel %vm560, %v584, 0
          %596 = vmatpush.msra.mxu0 0.0
          %597 = vmatpush.msra.mxu0 0.0
          %598 = vmatpush.msra.mxu0 0.0
          %599 = vmatpush.msra.mxu0 0.0
          %600 = vmatpush.msra.mxu0 0.0
          %601 = vmatpush.msra.mxu0 0.0
          %602 = vmatpush.msra.mxu0 0.0
          %603 = vmatpush.msra.mxu0 0.0
          %604 = vmatpush.msra.mxu0 0.0
          %605 = vmatpush.msra.mxu0 0.0
          %606 = vmatpush.msra.mxu0 0.0
          %607 = vmatpush.msra.mxu0 0.0
          %608 = vmatpush.msra.mxu0 %v588
          %609 = vmatpush.msra.mxu0 %v587
          %610 = vmatpush.msra.mxu0 %v586
          %611 = vmatpush.msra.mxu0 %v585
          %612 = vmatmul.f32.gmra.mxu0 %v594
          %v613 = vpop.f32.mrf.mxu0
          %v614 = vadd.f32 %v591, %v613
          %615 = vdwg.mxu0
          %v616 = vmul.f32 %v614, %v614
          %vm617 = vcmask 130048
          %v618 = vsel %vm617, %v616, 0.0
          %619 = vadd.xlane.f32.xlu0 %v618
          %v620 = vpop.xlane.xlu0 %619
          %v621 = vmax.f32 %v620, 1e-24
          %v622 = vrsqrt.pop %v621
          %v623 = vmul.f32 %v622, %v621
          %v624 = vmul.f32 %v623, %v622
          %v625 = vmul.f32 0.5, %v624
          %v626 = vsub.f32 1.5, %v625
          %v627 = vmul.f32 %v622, %v626
          %vm628 = vweird.f32 %v621
          %vm629 = vweird.f32 %v622
          %vm630 = vmor %vm628, %vm629
          %v631 = vsel %vm630, %v622, %v627
          %v632 = vmul.f32 %v614, %v631
          %v633 = vld [vmem:[%s538] sm:$0xff]
          %v634 = vld [vmem:[%s6] sm:$0xff]
          %v635 = vld [vmem:[%s6 + $0x8] sm:$0xff]
          %v636 = vld [vmem:[%s6 + $0x10] sm:$0xff]
          %v637 = vld [vmem:[%s6 + $0x18] sm:$0xff]
          %v638 = vld [vmem:[%s7] sm:$0x1]
          %v640 = vperm.slane %v638, 0
          %v643 = vsel %vm560, %v633, 0
          %645 = vmatpush.msra.mxu0 0.0
          %646 = vmatpush.msra.mxu0 0.0
          %647 = vmatpush.msra.mxu0 0.0
          %648 = vmatpush.msra.mxu0 0.0
          %649 = vmatpush.msra.mxu0 0.0
          %650 = vmatpush.msra.mxu0 0.0
          %651 = vmatpush.msra.mxu0 0.0
          %652 = vmatpush.msra.mxu0 0.0
          %653 = vmatpush.msra.mxu0 0.0
          %654 = vmatpush.msra.mxu0 0.0
          %655 = vmatpush.msra.mxu0 0.0
          %656 = vmatpush.msra.mxu0 0.0
          %657 = vmatpush.msra.mxu0 %v637
          %658 = vmatpush.msra.mxu0 %v636
          %659 = vmatpush.msra.mxu0 %v635
          %660 = vmatpush.msra.mxu0 %v634
          %661 = vmatmul.f32.gmra.mxu0 %v643
          %v662 = vpop.f32.mrf.mxu0
          %v663 = vadd.f32 %v640, %v662
          %664 = vdwg.mxu0
          %v665 = vmax.f32 %v663, 0.0
          %v666 = vld [vmem:[%s8] sm:$0xff]
          %v667 = vld [vmem:[%s8 + $0x8] sm:$0xff]
          %v668 = vld [vmem:[%s8 + $0x10] sm:$0xff]
          %v669 = vld [vmem:[%s8 + $0x18] sm:$0xff]
          %v670 = vld [vmem:[%s9] sm:$0x1]
          %v672 = vperm.slane %v670, 0
          %v675 = vsel %vm560, %v665, 0
          %677 = vmatpush.msra.mxu0 0.0
          %678 = vmatpush.msra.mxu0 0.0
          %679 = vmatpush.msra.mxu0 0.0
          %680 = vmatpush.msra.mxu0 0.0
          %681 = vmatpush.msra.mxu0 0.0
          %682 = vmatpush.msra.mxu0 0.0
          %683 = vmatpush.msra.mxu0 0.0
          %684 = vmatpush.msra.mxu0 0.0
          %685 = vmatpush.msra.mxu0 0.0
          %686 = vmatpush.msra.mxu0 0.0
          %687 = vmatpush.msra.mxu0 0.0
          %688 = vmatpush.msra.mxu0 0.0
          %689 = vmatpush.msra.mxu0 %v669
          %690 = vmatpush.msra.mxu0 %v668
          %691 = vmatpush.msra.mxu0 %v667
          %692 = vmatpush.msra.mxu0 %v666
          %693 = vmatmul.f32.gmra.mxu0 %v675
          %v694 = vpop.f32.mrf.mxu0
          %v695 = vadd.f32 %v672, %v694
          %696 = vdwg.mxu0
          %v697 = vmul.f32 %v695, %v695
          %v698 = vsel %vm617, %v697, 0.0
          %699 = vadd.xlane.f32.xlu0 %v698
          %v700 = vpop.xlane.xlu0 %699
          %v701 = vmax.f32 %v700, 1e-24
          %v702 = vrsqrt.pop %v701
          %v703 = vmul.f32 %v702, %v701
          %v704 = vmul.f32 %v703, %v702
          %v705 = vmul.f32 0.5, %v704
          %v706 = vsub.f32 1.5, %v705
          %v707 = vmul.f32 %v702, %v706
          %vm708 = vweird.f32 %v701
          %vm709 = vweird.f32 %v702
          %vm710 = vmor %vm708, %vm709
          %v711 = vsel %vm710, %v702, %v707
          %v712 = vmul.f32 %v695, %v711
          %v713 = vmul.f32 %v632, %v712
          %v714 = vsel %vm617, %v713, 0.0
          %715 = vadd.xlane.f32.xlu0 %v714
          %v716 = vpop.xlane.xlu0 %715
          %v717 = vmul.f32 %v716, 14.285714
          %vm718 = vcmask 7168
          %719 = vst.msk [vmem:[#allocation4] sm:$0xff] %vm718, %v717
          %v720 = vmul.f32 %v632, 14.285714
          %721 = vst.msk [vmem:[#allocation2] sm:$0xff] %vm617, %v720
          %722 = vxpose.xlu0.b32.start [1/16] %v712, 128
          %723 = vxpose.xlu0.b32.cont [2/16] 0.0, 128
          %724 = vxpose.xlu0.b32.cont [3/16] 0.0, 128
          %725 = vxpose.xlu0.b32.cont [4/16] 0.0, 128
          %726 = vxpose.xlu0.b32.cont [5/16] 0.0, 128
          %727 = vxpose.xlu0.b32.cont [6/16] 0.0, 128
          %728 = vxpose.xlu0.b32.cont [7/16] 0.0, 128
          %729 = vxpose.xlu0.b32.cont [8/16] 0.0, 128
          %730 = vxpose.xlu0.b32.cont [9/16] 0.0, 128
          %731 = vxpose.xlu0.b32.cont [10/16] 0.0, 128
          %732 = vxpose.xlu0.b32.cont [11/16] 0.0, 128
          %733 = vxpose.xlu0.b32.cont [12/16] 0.0, 128
          %734 = vxpose.xlu0.b32.cont [13/16] 0.0, 128
          %735 = vxpose.xlu0.b32.cont [14/16] 0.0, 128
          %736 = vxpose.xlu0.b32.cont [15/16] 0.0, 128
          %737 = vxpose.xlu0.b32.end [16/16] 0.0, 128
          %v738 = vpop.trf.xlu0
          %v739 = vpop.trf.xlu0
          %v740 = vpop.trf.xlu0
          %v741 = vpop.trf.xlu0
          %v742 = vpop.trf.xlu0
          %v743 = vpop.trf.xlu0
          %v744 = vpop.trf.xlu0
          %v745 = vpop.trf.xlu0
          %v746 = vpop.trf.xlu0
          %v747 = vpop.trf.xlu0
          %v748 = vpop.trf.xlu0
          %v749 = vpop.trf.xlu0
          %v750 = vpop.trf.xlu0
          %v751 = vpop.trf.xlu0
          %v752 = vpop.trf.xlu0
          %v753 = vpop.trf.xlu0
          %vm754 = vcmask 64512
          %755 = vst.msk [vmem:[#allocation3] sm:$0xff] %vm754, %v738
          %756 = vst.msk [vmem:[#allocation3 + $0x8] sm:$0xff] %vm754, %v739
        $region106: #{moco_forward.1} parent=97 // pred_fallthru
          _
        %v757 = vld [vmem:[#allocation2] sm:$0xff]
        %v758 = vld [vmem:[%s474] sm:$0xff]
        %v759 = vld [vmem:[%s474 + $0x8] sm:$0xff]
        %vm760 = vcmask 130048
        %v762 = vsel %vm760, %v757, 0
        %764 = vmatpush.msra.mxu0 0.0
        %765 = vmatpush.msra.mxu0 0.0
        %766 = vmatpush.msra.mxu0 0.0
        %767 = vmatpush.msra.mxu0 0.0
        %768 = vmatpush.msra.mxu0 0.0
        %769 = vmatpush.msra.mxu0 0.0
        %770 = vmatpush.msra.mxu0 0.0
        %771 = vmatpush.msra.mxu0 0.0
        %772 = vmatpush.msra.mxu0 0.0
        %773 = vmatpush.msra.mxu0 0.0
        %774 = vmatpush.msra.mxu0 0.0
        %775 = vmatpush.msra.mxu0 0.0
        %776 = vmatpush.msra.mxu0 0.0
        %777 = vmatpush.msra.mxu0 0.0
        %778 = vmatpush.msra.mxu0 %v759
        %779 = vmatpush.msra.mxu0 %v758
        %780 = vmatmul.f32.gmra.mxu0 %v762
        %v781 = vpop.f32.mrf.mxu0
        %v782 = vadd.f32 0.0, %v781
        %783 = vdwg.mxu0
        %784 = vst [vmem:[%s524] sm:$0xff] %v782
        %p785 = scmp.eq.s32.totalorder %s33, 1
        // Predicated region
        $region107: #{moco_forward.1} parent=97 // pred_check
          %p786 = pneg %p785
        $region108: #{moco_forward.1} parent=97 // pred_check_branch
          %788 = sbr.rel (%p786) target = $region110
        $region109: #{moco_forward.1} parent=97 // pred_region
          %v789 = vld [vmem:[#allocation4] sm:$0xff]
          %vm790 = vcmask 7168
          %791 = vst.msk [vmem:[%s542] sm:$0xff] %vm790, %v789
          %v792 = vld [vmem:[#allocation3] sm:$0xff]
          %v793 = vld [vmem:[#allocation3 + $0x8] sm:$0xff]
          %vm794 = vcmask 64512
          %795 = vst.msk [vmem:[%s546] sm:$0xff] %vm794, %v792
          %796 = vst.msk [vmem:[%s546 + $0x8] sm:$0xff] %vm794, %v793
        $region110: #{moco_forward.1} parent=97 // pred_fallthru
          _
        %p797 = scmp.lt.s32.totalorder %s32, 0
        %s798 = scalar_select %p797, %s32, 0
        %s799 = smul.addr %s798, 8
        %s800 = scalar_lea.vmem %s11, %s799
        %s801 = sand.u32 %s322, 1
        %s802 = scalar_lea.sflag [#allocation7], %s801
        %s803 = sand.u32 %s322, 1
        %s804 = smul.addr %s803, 8
        %s805 = scalar_lea.vmem [#allocation6], %s804
        %p806 = scmp.lt.s32.totalorder %s32, 0
        %s807 = scalar_select %p806, %s32, 0
        %s808 = smul.addr %s807, 8
        %s809 = scalar_lea.vmem %s13, %s808
        // Predicated region
        $region111: #{moco_forward.1} parent=97 // pred_check
          %p810 = pneg %p304
        $region112: #{moco_forward.1} parent=97 // pred_check_branch
          %812 = sbr.rel (%p810) target = $region114
        $region113: #{moco_forward.1} parent=97 // pred_region
          _
        $region114: #{moco_forward.1} parent=97 // pred_fallthru
          _
        // Predicated region
        $region115: #{moco_forward.1} parent=97 // pred_check
          %p813 = pneg %p332
        $region116: #{moco_forward.1} parent=97 // pred_check_branch
          %815 = sbr.rel (%p813) target = $region118
        $region117: #{moco_forward.1} parent=97 // pred_region
          %817 = vsyncadd %s802, 0
          %s818 = smul.addr %s32, 2
          %s819 = sadd.s32 %s33, %s818
          %s820 = smul.addr %s819, 8
          %s821 = scalar_lea.hbm %s12, %s820
          %s823 = sshll.u32 %s805, 4
          %s824 = int_to_ptr.vmem [resolvable:$true] %s823
          %s825 = sshll.u32 %s821, 4
          %s826 = int_to_ptr.hbm [resolvable:$true] %s825
          %828 = dma.vmem_to_hbm [thread:$0]  %s824, 128, %s826, %s802
        $region118: #{moco_forward.1} parent=97 // pred_fallthru
          _
        // Predicated region
        $region119: #{moco_forward.1} parent=97 // pred_check
          %p829 = pneg %p358
        $region120: #{moco_forward.1} parent=97 // pred_check_branch
          %831 = sbr.rel (%p829) target = $region122
        $region121: #{moco_forward.1} parent=97 // pred_region
          _
        $region122: #{moco_forward.1} parent=97 // pred_fallthru
          _
        // Predicated region
        $region123: #{moco_forward.1} parent=97 // pred_check
          %p832 = pneg %p304
        $region124: #{moco_forward.1} parent=97 // pred_check_branch
          %834 = sbr.rel (%p832) target = $region126
        $region125: #{moco_forward.1} parent=97 // pred_region
          %p835 = scmp.lt.s32.totalorder %s32, 0
          %s836 = scalar_select %p835, %s32, 0
          %s837 = smul.addr %s836, 8
          %s838 = scalar_lea.vmem %s11, %s837
        $region126: #{moco_forward.1} parent=97 // pred_fallthru
          _
        // Predicated region
        $region127: #{moco_forward.1} parent=97 // pred_check
          %p839 = pneg %p358
        $region128: #{moco_forward.1} parent=97 // pred_check_branch
          %841 = sbr.rel (%p839) target = $region130
        $region129: #{moco_forward.1} parent=97 // pred_region
          %p842 = scmp.lt.s32.totalorder %s32, 0
          %s843 = scalar_select %p842, %s32, 0
          %s844 = smul.addr %s843, 8
          %s845 = scalar_lea.vmem %s13, %s844
        $region130: #{moco_forward.1} parent=97 // pred_fallthru
          _
      $region98: #{moco_forward.1} parent=5 // pred_fallthru
        _
      %p846 = scmp.le.s32.totalorder 2, %s23
      // Predicated region
      $region131: #{moco_forward.1} parent=5 // pred_check
        %p847 = pneg %p846
      $region132: #{moco_forward.1} parent=5 // pred_check_branch
        %849 = sbr.rel (%p847) target = $region134
      $region133: #{moco_forward.1} parent=5 // pred_region
        %s850 = ssub.s32 %s23, 2
        // Predicated region
        $region135: #{moco_forward.1} parent=133 // pred_check
          %p851 = pneg %p338
        $region136: #{moco_forward.1} parent=133 // pred_check_branch
          %853 = sbr.rel (%p851) target = $region138
        $region137: #{moco_forward.1} parent=133 // pred_region
          %s854 = sand.u32 %s323, 1
          %s855 = scalar_lea.sflag [#allocation7], %s854
          %s856 = sand.u32 %s323, 1
          %s857 = smul.addr %s856, 8
          %s858 = scalar_lea.vmem [#allocation6], %s857
          %860 = dma.done %s855, 128
        $region138: #{moco_forward.1} parent=133 // pred_fallthru
          _
      $region134: #{moco_forward.1} parent=5 // pred_fallthru
        _
    $region6: #{moco_forward.1} parent=1 // loop_footer
      %s27 = sadd.s32 1, %s23
    $region7: #{moco_forward.1} parent=1 // loop_footer_branch
      %22 = sbr.rel target = $region3
    $region8: #{moco_forward.1} parent=1 // loop_exit
      _
    %861 = vsyncpa [#allocation7], 1
    %s862 = scalar_lea.sflag [#allocation7], 1
    %863 = vsyncpa %s862, 1

</llo_original>
